<compile_context>
chip_gen: v6e
topology: v6e:2x2x1
jax: 0.10.0
libtpu: 0.0.40
codegen_flags: <defaults>
</compile_context>

<pallas_src>
import numpy as np
import jax
import jax.numpy as jnp
from jax.experimental import pallas as pl
from jax.experimental.pallas import tpu as pltpu


def _round_up(x, m):
    return ((x + m - 1) // m) * m


# ----------------------------------------------------------------------------
# Kernel 1: raw "same" mask from multi-hot labels  (labels @ labels.T > 0)
# Only upper-triangular (j >= i) output tiles are computed; lower tiles are
# zero-filled and the host mirrors the result (the gram is symmetric).
# ----------------------------------------------------------------------------
def _sames_kernel(li_ref, lj_ref, out_ref):
    i = pl.program_id(0)
    j = pl.program_id(1)

    @pl.when(j >= i)
    def _():
        gram = jax.lax.dot_general(
            li_ref[...], lj_ref[...], (((1,), (1,)), ((), ())),
            preferred_element_type=jnp.float32)          # (tile, tile)
        out_ref[...] = (gram > 0).astype(jnp.int8)

    @pl.when(j < i)
    def _():
        out_ref[...] = jnp.zeros_like(out_ref)


def sames_raw_pallas(labels):
    B, L = labels.shape
    tile = 256 if B >= 256 else 128                       # adaptive: less padding for small B
    B_pad = _round_up(B, tile)
    # {0,1} multi-hot labels are exact in bf16; casting once in the wrapper
    # halves/quarters the label HBM->VMEM DMA and removes per-step repacks.
    lab = jnp.pad(jnp.asarray(labels, jnp.float32),
                  ((0, B_pad - B), (0, 0))).astype(jnp.bfloat16)
    g = B_pad // tile
    out = pl.pallas_call(
        _sames_kernel,
        out_shape=jax.ShapeDtypeStruct((B_pad, B_pad), jnp.int8),
        grid=(g, g),
        in_specs=[pl.BlockSpec((tile, L), lambda i, j: (i, 0)),   # row tile of labels
                  pl.BlockSpec((tile, L), lambda i, j: (j, 0))],  # col tile of labels
        out_specs=pl.BlockSpec((tile, tile), lambda i, j: (i, j)),
        compiler_params=pltpu.CompilerParams(
            dimension_semantics=("parallel", "parallel")),
    )(lab, lab)
    return out, B                                          # padded; host slices/mirrors


# ----------------------------------------------------------------------------
# Kernel 2: distance matrix (F.normalize(p=2, dim=1) + cosine / (sq)euclidean)
# K-tiled matmul over D with an f32 VMEM accumulator.
# ----------------------------------------------------------------------------
def _make_dist_kernel(dist_type):
    def kernel(xi_ref, xj_ref, sqi_ref, sqj_ref, out_ref, acc_ref):
        @pl.when(pl.program_id(2) == 0)
        def _():
            acc_ref[...] = jnp.zeros_like(acc_ref)

        acc_ref[...] += jax.lax.dot_general(
            xi_ref[...], xj_ref[...], (((1,), (1,)), ((), ())),
            preferred_element_type=jnp.float32)            # (tile_m, tile_n)

        @pl.when(pl.program_id(2) == pl.num_programs(2) - 1)
        def _():
            g = acc_ref[...]                                # cosine similarity
            if dist_type == 'cosine':
                out_ref[...] = -g
            else:
                # ||xn_i||^2 is 1 for non-degenerate rows, 0 for all-zero rows.
                # TODO(synk): gemm-based ||a-b||^2 has cancellation for nearly
                #             identical rows; clamp handles negatives only.
                d2 = jnp.maximum(sqi_ref[...] + sqj_ref[...] - 2.0 * g, 0.0)
                if dist_type == 'euclidean':
                    out_ref[...] = jnp.sqrt(d2)
                else:                                       # squared_euclidean
                    out_ref[...] = d2
    return kernel


def distance_pallas(x, dist_type):
    if dist_type not in ('cosine', 'euclidean', 'squared_euclidean'):
        raise NotImplementedError(f'not support: {dist_type}')
    B, D = x.shape
    if B >= 512:
        tile_m, tile_n = 512, 256      # rectangular tiles: xi resident across j
    elif B >= 256:
        tile_m = tile_n = 256
    else:
        tile_m = tile_n = 128
    B_pad = _round_up(B, tile_m)       # tile_n divides tile_m in every branch

    # Normalize once in the wrapper (O(B*D), negligible vs the O(B^2*D) matmul)
    # so the kernel ordering matches PyTorch's normalize-then-matmul.
    xp = jnp.pad(jnp.asarray(x, jnp.float32), ((0, B_pad - B), (0, 0)))
    norms = jnp.sqrt(jnp.sum(xp * xp, axis=1, keepdims=True))
    xn = xp / jnp.maximum(norms, 1e-12)                    # F.normalize eps
    sq = jnp.sum(xn * xn, axis=1)                          # 1.0, or 0.0 for zero rows
    sq_col = sq.reshape(B_pad, 1)
    sq_row = sq.reshape(1, B_pad)

    # K axis over D bounds per-step VMEM independent of D.
    if D > 512:
        tk = 512
        D_pad = _round_up(D, tk)
        xn = jnp.pad(xn, ((0, 0), (0, D_pad - D)))
    else:
        tk = D
        D_pad = D
    gm, gn, gk = B_pad // tile_m, B_pad // tile_n, D_pad // tk

    out = pl.pallas_call(
        _make_dist_kernel(dist_type),
        out_shape=jax.ShapeDtypeStruct((B_pad, B_pad), jnp.float32),
        grid=(gm, gn, gk),
        in_specs=[pl.BlockSpec((tile_m, tk), lambda i, j, k: (i, k)),
                  pl.BlockSpec((tile_n, tk), lambda i, j, k: (j, k)),
                  pl.BlockSpec((tile_m, 1), lambda i, j, k: (i, 0)),
                  pl.BlockSpec((1, tile_n), lambda i, j, k: (0, j))],
        out_specs=pl.BlockSpec((tile_m, tile_n), lambda i, j, k: (i, j)),
        scratch_shapes=[pltpu.VMEM((tile_m, tile_n), jnp.float32)],
        compiler_params=pltpu.CompilerParams(
            dimension_semantics=("parallel", "parallel", "arbitrary"),
            vmem_limit_bytes=48 * 1024 * 1024),            # explicit: v5e default 16 MiB too small
    )(xn, xn, sq_col, sq_row)
    return out   # padded (B_pad, B_pad); gather directly (all indices < B)


# ----------------------------------------------------------------------------
# Kernel 3: margin-violation condition over lane-dense distance slabs
# ----------------------------------------------------------------------------
def _make_condition_kernel(margin, type_of_quadruplets, what_is_hard):
    margin = float(margin)
    if what_is_hard == 'one':
        opt = lambda a, b: a | b
    elif what_is_hard == 'all':
        opt = lambda a, b: a & b
    else:
        raise NotImplementedError(f'not support: {what_is_hard}')

    def kernel(ij_ref, ik_ref, in_ref, out_ref):
        inn = in_ref[...]
        m1 = inn - ij_ref[...]
        m2 = inn - ik_ref[...]
        if type_of_quadruplets == 'easy':
            cond = opt(m1 > margin, m2 > margin)
        else:
            cond = opt(m1 <= margin, m2 <= margin)
            if type_of_quadruplets == 'hard':
                cond = cond & opt(m1 <= 0.0, m2 <= 0.0)
            elif type_of_quadruplets == 'semi-hard':
                cond = cond & opt(m1 > 0.0, m2 > 0.0)
            # else: 'all' -> pass
        out_ref[...] = cond.astype(jnp.int8)
    return kernel


def condition_pallas(ij_d, ik_d, in_d, margin, type_of_quadruplets, what_is_hard):
    Q = int(ij_d.shape[0])
    if Q == 0:
        return jnp.zeros((0,), jnp.int8)
    WIDTH = 1024                         # wide lane-dense layout -> unmasked wide stores
    R = -(-Q // WIDTH)
    if R <= 512:
        R_pad, TR = R, R                 # single full-array block
    else:
        TR = 256
        R_pad = _round_up(R, TR)
    Q_pad = R_pad * WIDTH

    def pack(v):                         # three separate inputs: no (3,R,W) stack copy
        return jnp.pad(v.astype(jnp.float32), (0, Q_pad - Q)).reshape(R_pad, WIDTH)

    out = pl.pallas_call(
        _make_condition_kernel(margin, type_of_quadruplets, what_is_hard),
        out_shape=jax.ShapeDtypeStruct((R_pad, WIDTH), jnp.int8),
        grid=(R_pad // TR,),
        in_specs=[pl.BlockSpec((TR, WIDTH), lambda r: (r, 0))] * 3,
        out_specs=pl.BlockSpec((TR, WIDTH), lambda r: (r, 0)),
        compiler_params=pltpu.CompilerParams(dimension_semantics=("parallel",)),
    )(pack(ij_d), pack(ik_d), pack(in_d))
    return out.reshape(-1)[:Q]


# ----------------------------------------------------------------------------
# Host-side (dynamic shape) quadruplet enumeration — numpy glue
# TODO(synk): torch.where / nonzero produce data-dependent output shapes; no
#             clean Pallas equivalent, so the index bookkeeping stays on host.
# ----------------------------------------------------------------------------
def enumerate_quadruplets(same_raw_padded_np, B):
    s = same_raw_padded_np[:B, :B].astype(bool)
    same = s | s.T                                # kernel only filled j >= i tiles
    diffs = ~same                                 # torch: diffs computed before diag zeroing
    sames = same.copy()
    np.fill_diagonal(sames, False)
    triu = np.triu(np.ones((B, B), dtype=bool), k=1)
    # TODO(synk): dense B^3 boolean tensor; replace with a per-row loop for very large B.
    prod = sames[:, :, None] & sames[:, None, :] & triu[None, :, :]
    I, J, K = np.nonzero(prod)
    if I.size == 0:
        return None
    N = np.argwhere(diffs[I])                     # rows of (quad_row, neg_index)
    if N.size == 0:
        return None
    idx = N[:, 0]
    return np.stack([I[idx], J[idx], K[idx], N[:, 1]], axis=1)


# ----------------------------------------------------------------------------
# Module wrapper
# ----------------------------------------------------------------------------
class QuadrupletMarginMiner:
    """Returns quadruplets (A, P1, P2, N) that violate the margin."""

    def __init__(self, margin, type_of_distance, type_of_quadruplets, what_is_hard):
        self.margin = float(margin)
        self.type_of_distance = type_of_distance
        self.type_of_quadruplets = type_of_quadruplets
        self.what_is_hard = what_is_hard

    def __call__(self, logits, labels):
        # 1) dispatch BOTH device kernels up front (async): the distance matmul
        #    overlaps the blocking device->host transfer + numpy enumeration.
        same_raw_padded, B = sames_raw_pallas(labels)
        mat_padded = distance_pallas(logits, self.type_of_distance)

        # 2) enumerate candidate quadruplets (host, dynamic shape)
        same_np = np.asarray(jax.device_get(same_raw_padded))
        quadruplets = enumerate_quadruplets(same_np, B)
        if quadruplets is None:
            return None

        # 3) gather pairwise distances directly from the padded matrix (no slice copy)
        q = jnp.asarray(quadruplets, dtype=jnp.int32)
        I, J, K, N = q[:, 0], q[:, 1], q[:, 2], q[:, 3]
        ij_dists = mat_padded[I, J]
        ik_dists = mat_padded[I, K]
        in_dists = mat_padded[I, N]

        # 4) margin-violation condition (Pallas lane-dense elementwise kernel)
        cond = condition_pallas(ij_dists, ik_dists, in_dists,
                                self.margin, self.type_of_quadruplets,
                                self.what_is_hard)
        cond_np = np.asarray(jax.device_get(cond)).astype(bool)
        if not cond_np.any():
            return None
        return jnp.asarray(quadruplets[cond_np], dtype=jnp.int32)


# ----------------------------------------------------------------------------
# Demo
# ----------------------------------------------------------------------------
if __name__ == "__main__":
    key = jax.random.PRNGKey(0)
    B, D, L = 8, 32, 5

    logits = jax.random.normal(key, (B, D), dtype=jnp.float32)

    # deterministic multi-hot labels guaranteeing some quadruplets exist
    labels = jnp.array([
        [1, 0, 0, 0, 0],
        [1, 0, 0, 0, 0],
        [1, 1, 0, 0, 0],
        [0, 1, 0, 0, 0],
        [0, 0, 1, 0, 0],
        [0, 0, 1, 0, 0],
        [0, 0, 0, 1, 0],
        [0, 0, 0, 1, 1],
    ], dtype=jnp.float32)

    miner = QuadrupletMarginMiner(
        margin=0.1,
        type_of_distance='cosine',
        type_of_quadruplets='all',
        what_is_hard='one',
    )

    out = miner(logits, labels)
    if out is not None:
        jax.block_until_ready(out)

    # light correctness check: device distance matrix vs f64 numpy reference
    xr = np.asarray(logits, np.float64)
    xr = xr / np.maximum(np.linalg.norm(xr, axis=1, keepdims=True), 1e-12)
    ref_mat = -(xr @ xr.T)
    dev_mat = np.asarray(jax.device_get(distance_pallas(logits, 'cosine')))[:B, :B]
    assert np.allclose(dev_mat, ref_mat, atol=1e-5), "distance matrix mismatch"

    print("KERNEL_OK")
</pallas_src>

<mosaic_0001>
module attributes {stable_mosaic.version = 11 : i64} {
  func.func @_sames_kernel(%arg0: i32, %arg1: i32, %arg2: memref<128x5xbf16, #tpu.memory_space<vmem>>, %arg3: memref<128x5xbf16, #tpu.memory_space<vmem>>, %arg4: memref<128x128xi8, #tpu.memory_space<vmem>>) attributes {dimension_semantics = [#tpu.dimension_semantics<parallel>, #tpu.dimension_semantics<parallel>], iteration_bounds = array<i64: 1, 1>, scalar_prefetch = 0 : i64, scratch_operands = 0 : i64, tpu.core_type = #tpu.core_type<tc>, window_params = [{transform_indices = @transform_0, window_bounds = array<i64: 128, 5>}, {transform_indices = @transform_1, window_bounds = array<i64: 128, 5>}, {transform_indices = @transform_2, window_bounds = array<i64: 128, 128>}]} {
    %0 = arith.cmpi sge, %arg1, %arg0 : i32
    %1 = arith.extui %0 : i1 to i32
    %c0_i32 = arith.constant 0 : i32
    %2 = arith.cmpi ne, %1, %c0_i32 : i32
    scf.if %2 {
      %c0 = arith.constant 0 : index
      %c0_1 = arith.constant 0 : index
      %6 = vector.load %arg2[%c0, %c0_1] : memref<128x5xbf16, #tpu.memory_space<vmem>>, vector<128x5xbf16>
      %c0_2 = arith.constant 0 : index
      %c0_3 = arith.constant 0 : index
      %7 = vector.load %arg3[%c0_2, %c0_3] : memref<128x5xbf16, #tpu.memory_space<vmem>>, vector<128x5xbf16>
      %cst = arith.constant dense<0.000000e+00> : vector<128x128xf32>
      %8 = tpu.matmul %6, %7, %cst {dimension_numbers = #tpu.dot_dimension_numbers<[1], [1], [0], [0], [0, 0, 1, 0], [], []>} : vector<128x5xbf16>, vector<128x5xbf16>, vector<128x128xf32> -> vector<128x128xf32>
      %cst_4 = arith.constant 0.000000e+00 : f32
      %9 = vector.broadcast %cst_4 : f32 to vector<128x128xf32>
      %10 = arith.cmpf ogt, %8, %9 : vector<128x128xf32>
      %11 = arith.extui %10 : vector<128x128xi1> to vector<128x128xi8>
      %c0_5 = arith.constant 0 : index
      %c0_6 = arith.constant 0 : index
      %12 = vector.load %arg4[%c0_5, %c0_6] : memref<128x128xi8, #tpu.memory_space<vmem>>, vector<128x128xi8>
      tpu.vector_store %arg4[%c0_5, %c0_6], %11 {strides = array<i32>} : memref<128x128xi8, #tpu.memory_space<vmem>>, vector<128x128xi8>,
    } else {
    }
    %3 = arith.cmpi slt, %arg1, %arg0 : i32
    %4 = arith.extui %3 : i1 to i32
    %c0_i32_0 = arith.constant 0 : i32
    %5 = arith.cmpi ne, %4, %c0_i32_0 : i32
    scf.if %5 {
      %c0_i8 = arith.constant 0 : i8
      %6 = vector.broadcast %c0_i8 : i8 to vector<128x128xi8>
      %c0 = arith.constant 0 : index
      %c0_1 = arith.constant 0 : index
      %7 = vector.load %arg4[%c0, %c0_1] : memref<128x128xi8, #tpu.memory_space<vmem>>, vector<128x128xi8>
      tpu.vector_store %arg4[%c0, %c0_1], %6 {strides = array<i32>} : memref<128x128xi8, #tpu.memory_space<vmem>>, vector<128x128xi8>,
    } else {
    }
    return
  }
  func.func @transform_0(%arg0: i32, %arg1: i32) -> (i32, i32) {
    %c0_i32 = arith.constant 0 : i32
    %c0_i32_0 = arith.constant 0 : i32
    return %arg0, %c0_i32 : i32, i32
  }
  func.func @transform_1(%arg0: i32, %arg1: i32) -> (i32, i32) {
    %c0_i32 = arith.constant 0 : i32
    %c0_i32_0 = arith.constant 0 : i32
    return %arg1, %c0_i32 : i32, i32
  }
  func.func @transform_2(%arg0: i32, %arg1: i32) -> (i32, i32) {
    %c0_i32 = arith.constant 0 : i32
    return %arg0, %arg1 : i32, i32
  }
}

</mosaic_0001>

<llo_original>
// kernel: tpu_custom_call.1
$region0: #{tpu_custom_call.1}
  #allocation0 [shape = 'u32[]', space=smem, size = 0x4, offset = 0x4, fixed_abs, tag = 'smem constant byte address 0x4 - core index']
  #allocation1 [shape = 'u32[144,128]{1,0:T(1,128)}', space=vmem, size = 0x12000, scoped, tag = 'internal scratch']
  %s0 = inlined_call_operand.vmem [shape: bf16[128,5], index: 0, kind: input, shape index: {}]
  %s1 = inlined_call_operand.vmem [shape: bf16[128,5], index: 1, kind: input, shape index: {}]
  %s2 = inlined_call_operand.hbm [shape: s8[128,128], index: 2, kind: output, shape index: {}]
  %s3 = sld [smem:[#allocation0]]
  $region26: #{tpu_custom_call.1} parent=0
    _
  %s5 = ssub.s32 1, %s3
  %s6 = scalar_select 0, %s5, %s3
  $region1: #{tpu_custom_call.1} parent=0
    #allocation2 [shape = 'u8[16384]{0}', space=vmem, size = 0x4000, scoped, tag = 'output window, operand 0, single buffered']
    #allocation3 [shape = 's32[1]{0}', space=sflag, size = 0x4, scoped, tag = 'scoped memory for tpu_custom_call.1']
    %7 = vsyncpa [#allocation3], 0
    // Predicated region
    $region2: #{tpu_custom_call.1} parent=1 // pred_check
      _
    $region3: #{tpu_custom_call.1} parent=1 // pred_check_branch
      %9 = sbr.rel (0) target = $region5
    $region4: #{tpu_custom_call.1} parent=1 // pred_region
      _
    $region5: #{tpu_custom_call.1} parent=1 // pred_fallthru
      _
    // Predicated region
    $region6: #{tpu_custom_call.1} parent=1 // pred_check
      _
    $region7: #{tpu_custom_call.1} parent=1 // pred_check_branch
      %11 = sbr.rel (0) target = $region9
    $region8: #{tpu_custom_call.1} parent=1 // pred_region
      _
    $region9: #{tpu_custom_call.1} parent=1 // pred_fallthru
      _
    %p15 = scmp.ge.s32.totalorder 0, 0
    // Predicated region
    $region10: #{tpu_custom_call.1} parent=1 // pred_check
      %p16 = pneg %p15
    $region11: #{tpu_custom_call.1} parent=1 // pred_check_branch
      %18 = sbr.rel (%p16) target = $region13
    $region12: #{tpu_custom_call.1} parent=1 // pred_region
      %v19 = vld [vmem:[%s0] sm:$0xf]
      %v20 = vld [vmem:[%s0 + $0x4] sm:$0xf]
      %v21 = vld [vmem:[%s0 + $0x8] sm:$0xf]
      %v22 = vld [vmem:[%s0 + $0xc] sm:$0xf]
      %v23 = vld [vmem:[%s0 + $0x10] sm:$0xf]
      %v24 = vld [vmem:[%s0 + $0x14] sm:$0xf]
      %v25 = vld [vmem:[%s0 + $0x18] sm:$0xf]
      %v26 = vld [vmem:[%s0 + $0x1c] sm:$0xf]
      %v27 = vld [vmem:[%s0 + $0x20] sm:$0xf]
      %v28 = vld [vmem:[%s0 + $0x24] sm:$0xf]
      %v29 = vld [vmem:[%s0 + $0x28] sm:$0xf]
      %v30 = vld [vmem:[%s0 + $0x2c] sm:$0xf]
      %v31 = vld [vmem:[%s0 + $0x30] sm:$0xf]
      %v32 = vld [vmem:[%s0 + $0x34] sm:$0xf]
      %v33 = vld [vmem:[%s0 + $0x38] sm:$0xf]
      %v34 = vld [vmem:[%s0 + $0x3c] sm:$0xf]
      %v35 = vld [vmem:[%s1] sm:$0xf]
      %v36 = vld [vmem:[%s1 + $0x4] sm:$0xf]
      %v37 = vld [vmem:[%s1 + $0x8] sm:$0xf]
      %v38 = vld [vmem:[%s1 + $0xc] sm:$0xf]
      %v39 = vld [vmem:[%s1 + $0x10] sm:$0xf]
      %v40 = vld [vmem:[%s1 + $0x14] sm:$0xf]
      %v41 = vld [vmem:[%s1 + $0x18] sm:$0xf]
      %v42 = vld [vmem:[%s1 + $0x1c] sm:$0xf]
      %v43 = vld [vmem:[%s1 + $0x20] sm:$0xf]
      %v44 = vld [vmem:[%s1 + $0x24] sm:$0xf]
      %v45 = vld [vmem:[%s1 + $0x28] sm:$0xf]
      %v46 = vld [vmem:[%s1 + $0x2c] sm:$0xf]
      %v47 = vld [vmem:[%s1 + $0x30] sm:$0xf]
      %v48 = vld [vmem:[%s1 + $0x34] sm:$0xf]
      %v49 = vld [vmem:[%s1 + $0x38] sm:$0xf]
      %v50 = vld [vmem:[%s1 + $0x3c] sm:$0xf]
      %v67 = vunpack.c.l.b16 %v19
      %v68 = vunpack.c.l.b16 %v20
      %v69 = vunpack.c.l.b16 %v21
      %v70 = vunpack.c.l.b16 %v22
      %v71 = vunpack.c.l.b16 %v23
      %v72 = vunpack.c.l.b16 %v24
      %v73 = vunpack.c.l.b16 %v25
      %v74 = vunpack.c.l.b16 %v26
      %v75 = vunpack.c.l.b16 %v27
      %v76 = vunpack.c.l.b16 %v28
      %v77 = vunpack.c.l.b16 %v29
      %v78 = vunpack.c.l.b16 %v30
      %v79 = vunpack.c.l.b16 %v31
      %v80 = vunpack.c.l.b16 %v32
      %v81 = vunpack.c.l.b16 %v33
      %v82 = vunpack.c.l.b16 %v34
      %v83 = vpack.c.b16 %v68, %v67
      %v84 = vpack.c.b16 %v70, %v69
      %v85 = vpack.c.b16 %v72, %v71
      %v86 = vpack.c.b16 %v74, %v73
      %v87 = vpack.c.b16 %v76, %v75
      %v88 = vpack.c.b16 %v78, %v77
      %v89 = vpack.c.b16 %v80, %v79
      %v90 = vpack.c.b16 %v82, %v81
      %v107 = vunpack.c.l.b16 %v35
      %v108 = vunpack.c.l.b16 %v36
      %v109 = vunpack.c.l.b16 %v37
      %v110 = vunpack.c.l.b16 %v38
      %v111 = vunpack.c.l.b16 %v39
      %v112 = vunpack.c.l.b16 %v40
      %v113 = vunpack.c.l.b16 %v41
      %v114 = vunpack.c.l.b16 %v42
      %v115 = vunpack.c.l.b16 %v43
      %v116 = vunpack.c.l.b16 %v44
      %v117 = vunpack.c.l.b16 %v45
      %v118 = vunpack.c.l.b16 %v46
      %v119 = vunpack.c.l.b16 %v47
      %v120 = vunpack.c.l.b16 %v48
      %v121 = vunpack.c.l.b16 %v49
      %v122 = vunpack.c.l.b16 %v50
      %v123 = vpack.c.b16 %v108, %v107
      %v124 = vpack.c.b16 %v110, %v109
      %v125 = vpack.c.b16 %v112, %v111
      %v126 = vpack.c.b16 %v114, %v113
      %v127 = vpack.c.b16 %v116, %v115
      %v128 = vpack.c.b16 %v118, %v117
      %v129 = vpack.c.b16 %v120, %v119
      %v130 = vpack.c.b16 %v122, %v121
      %vm131 = vcmask 39936
      %v133 = vsel %vm131, %v83, 0
      %v136 = vsel %vm131, %v84, 0
      %v139 = vsel %vm131, %v85, 0
      %v142 = vsel %vm131, %v86, 0
      %v145 = vsel %vm131, %v87, 0
      %v148 = vsel %vm131, %v88, 0
      %v151 = vsel %vm131, %v89, 0
      %v154 = vsel %vm131, %v90, 0
      %v157 = vsel %vm131, %v123, 0
      %v160 = vsel %vm131, %v124, 0
      %v163 = vsel %vm131, %v125, 0
      %v166 = vsel %vm131, %v126, 0
      %v169 = vsel %vm131, %v127, 0
      %v172 = vsel %vm131, %v128, 0
      %v175 = vsel %vm131, %v129, 0
      %v178 = vsel %vm131, %v130, 0
      %180 = vmatprep.subr.bf16.mxu0 0
      %181 = vmatpush1.bf16.xpose.msra.mxu0 %v178
      %182 = vmatprep.subr.bf16.mxu0 0
      %183 = vmatpush1.bf16.xpose.msra.mxu0 %v175
      %184 = vmatprep.subr.bf16.mxu0 0
      %185 = vmatpush1.bf16.xpose.msra.mxu0 %v172
      %186 = vmatprep.subr.bf16.mxu0 0
      %187 = vmatpush1.bf16.xpose.msra.mxu0 %v169
      %188 = vmatprep.subr.bf16.mxu0 0
      %189 = vmatpush1.bf16.xpose.msra.mxu0 %v166
      %190 = vmatprep.subr.bf16.mxu0 0
      %191 = vmatpush1.bf16.xpose.msra.mxu0 %v163
      %192 = vmatprep.subr.bf16.mxu0 0
      %193 = vmatpush1.bf16.xpose.msra.mxu0 %v160
      %194 = vmatprep.subr.bf16.mxu0 0
      %195 = vmatpush1.bf16.xpose.msra.mxu0 %v157
      %196 = vmatprep.subr.bf16.mxu0 0
      %197 = vmatpush2.bf16.xpose.msra.mxu0 0
      %198 = vmatprep.subr.bf16.mxu0 0
      %199 = vmatpush2.bf16.xpose.msra.mxu0 0
      %200 = vmatprep.subr.bf16.mxu0 0
      %201 = vmatpush2.bf16.xpose.msra.mxu0 0
      %202 = vmatprep.subr.bf16.mxu0 0
      %203 = vmatpush2.bf16.xpose.msra.mxu0 0
      %204 = vmatprep.subr.bf16.mxu0 0
      %205 = vmatpush2.bf16.xpose.msra.mxu0 0
      %206 = vmatprep.subr.bf16.mxu0 0
      %207 = vmatpush2.bf16.xpose.msra.mxu0 0
      %208 = vmatprep.subr.bf16.mxu0 0
      %209 = vmatpush2.bf16.xpose.msra.mxu0 0
      %210 = vmatprep.subr.bf16.mxu0 0
      %211 = vmatpush2.bf16.xpose.msra.mxu0 0
      %212 = vmatprep.mubr.bf16.mxu0 0
      %213 = vmatmul.mubr.bf16.gmra.mxu0 %v133
      %v214 = vpop.f32.mrf.mxu0
      %v215 = vadd.f32 0.0, %v214
      %v216 = vpop.f32.mrf.mxu0
      %v217 = vpop.f32.mrf.mxu0
      %v218 = vadd.f32 0.0, %v217
      %v219 = vpop.f32.mrf.mxu0
      %220 = vmatprep.mubr.bf16.mxu0 0
      %221 = vmatmul.mubr.bf16.gmra.mxu0 %v136
      %v222 = vpop.f32.mrf.mxu0
      %v223 = vadd.f32 0.0, %v222
      %v224 = vpop.f32.mrf.mxu0
      %v225 = vpop.f32.mrf.mxu0
      %v226 = vadd.f32 0.0, %v225
      %v227 = vpop.f32.mrf.mxu0
      %228 = vmatprep.mubr.bf16.mxu0 0
      %229 = vmatmul.mubr.bf16.gmra.mxu0 %v139
      %v230 = vpop.f32.mrf.mxu0
      %v231 = vadd.f32 0.0, %v230
      %v232 = vpop.f32.mrf.mxu0
      %v233 = vpop.f32.mrf.mxu0
      %v234 = vadd.f32 0.0, %v233
      %v235 = vpop.f32.mrf.mxu0
      %236 = vmatprep.mubr.bf16.mxu0 0
      %237 = vmatmul.mubr.bf16.gmra.mxu0 %v142
      %v238 = vpop.f32.mrf.mxu0
      %v239 = vadd.f32 0.0, %v238
      %v240 = vpop.f32.mrf.mxu0
      %v241 = vpop.f32.mrf.mxu0
      %v242 = vadd.f32 0.0, %v241
      %v243 = vpop.f32.mrf.mxu0
      %244 = vmatprep.mubr.bf16.mxu0 0
      %245 = vmatmul.mubr.bf16.gmra.mxu0 %v145
      %v246 = vpop.f32.mrf.mxu0
      %v247 = vadd.f32 0.0, %v246
      %v248 = vpop.f32.mrf.mxu0
      %v249 = vpop.f32.mrf.mxu0
      %v250 = vadd.f32 0.0, %v249
      %v251 = vpop.f32.mrf.mxu0
      %252 = vmatprep.mubr.bf16.mxu0 0
      %253 = vmatmul.mubr.bf16.gmra.mxu0 %v148
      %v254 = vpop.f32.mrf.mxu0
      %v255 = vadd.f32 0.0, %v254
      %v256 = vpop.f32.mrf.mxu0
      %v257 = vpop.f32.mrf.mxu0
      %v258 = vadd.f32 0.0, %v257
      %v259 = vpop.f32.mrf.mxu0
      %260 = vmatprep.mubr.bf16.mxu0 0
      %261 = vmatmul.mubr.bf16.gmra.mxu0 %v151
      %v262 = vpop.f32.mrf.mxu0
      %v263 = vadd.f32 0.0, %v262
      %v264 = vpop.f32.mrf.mxu0
      %v265 = vpop.f32.mrf.mxu0
      %v266 = vadd.f32 0.0, %v265
      %v267 = vpop.f32.mrf.mxu0
      %268 = vmatprep.mubr.bf16.mxu0 0
      %269 = vmatmul.mubr.bf16.gmra.mxu0 %v154
      %v270 = vpop.f32.mrf.mxu0
      %v271 = vadd.f32 0.0, %v270
      %v272 = vpop.f32.mrf.mxu0
      %v273 = vpop.f32.mrf.mxu0
      %v274 = vadd.f32 0.0, %v273
      %v275 = vpop.f32.mrf.mxu0
      %276 = vdwg.mxu0
      %vm277 = vcmp.gt.f32.partialorder %v215, 0.0
      %vm278 = vcmp.gt.f32.partialorder %v218, 0.0
      %vm279 = vcmp.gt.f32.partialorder %v223, 0.0
      %vm280 = vcmp.gt.f32.partialorder %v226, 0.0
      %vm281 = vcmp.gt.f32.partialorder %v231, 0.0
      %vm282 = vcmp.gt.f32.partialorder %v234, 0.0
      %vm283 = vcmp.gt.f32.partialorder %v239, 0.0
      %vm284 = vcmp.gt.f32.partialorder %v242, 0.0
      %vm285 = vcmp.gt.f32.partialorder %v247, 0.0
      %vm286 = vcmp.gt.f32.partialorder %v250, 0.0
      %vm287 = vcmp.gt.f32.partialorder %v255, 0.0
      %vm288 = vcmp.gt.f32.partialorder %v258, 0.0
      %vm289 = vcmp.gt.f32.partialorder %v263, 0.0
      %vm290 = vcmp.gt.f32.partialorder %v266, 0.0
      %vm291 = vcmp.gt.f32.partialorder %v271, 0.0
      %vm292 = vcmp.gt.f32.partialorder %v274, 0.0
      %vm293 = vmpackc.low %vm278, %vm277
      %vm294 = vmpackc.low %vm280, %vm279
      %vm295 = vmpackc.even %vm294, %vm293
      %vm296 = vmpackc.low %vm282, %vm281
      %vm297 = vmpackc.low %vm284, %vm283
      %vm298 = vmpackc.even %vm297, %vm296
      %vm299 = vmpackc.low %vm286, %vm285
      %vm300 = vmpackc.low %vm288, %vm287
      %vm301 = vmpackc.even %vm300, %vm299
      %vm302 = vmpackc.low %vm290, %vm289
      %vm303 = vmpackc.low %vm292, %vm291
      %vm304 = vmpackc.even %vm303, %vm302
      %v305 = vsel %vm295, 16843009, 0
      %v306 = vsel %vm298, 16843009, 0
      %v307 = vsel %vm301, 16843009, 0
      %v308 = vsel %vm304, 16843009, 0
      %309 = vst [vmem:[#allocation2] sm:$0xff] %v305
      %310 = vst [vmem:[#allocation2 + $0x8] sm:$0xff] %v306
      %311 = vst [vmem:[#allocation2 + $0x10] sm:$0xff] %v307
      %312 = vst [vmem:[#allocation2 + $0x18] sm:$0xff] %v308
    $region13: #{tpu_custom_call.1} parent=1 // pred_fallthru
      _
    %p313 = scmp.lt.s32.totalorder 0, 0
    // Predicated region
    $region14: #{tpu_custom_call.1} parent=1 // pred_check
      %p314 = pneg %p313
    $region15: #{tpu_custom_call.1} parent=1 // pred_check_branch
      %316 = sbr.rel (%p314) target = $region17
    $region16: #{tpu_custom_call.1} parent=1 // pred_region
      %317 = vst [vmem:[#allocation2] sm:$0xff] 0
      %318 = vst [vmem:[#allocation2 + $0x8] sm:$0xff] 0
      %319 = vst [vmem:[#allocation2 + $0x10] sm:$0xff] 0
      %320 = vst [vmem:[#allocation2 + $0x18] sm:$0xff] 0
    $region17: #{tpu_custom_call.1} parent=1 // pred_fallthru
      _
    // Predicated region
    $region18: #{tpu_custom_call.1} parent=1 // pred_check
      _
    $region19: #{tpu_custom_call.1} parent=1 // pred_check_branch
      %322 = sbr.rel (0) target = $region21
    $region20: #{tpu_custom_call.1} parent=1 // pred_region
      %s324 = ssub.s32 512, 512
      %325 = vsyncadd [#allocation3], %s324
      %s326 = sshll.u32 [#allocation2], 4
      %s327 = int_to_ptr.vmem [resolvable:$true] %s326
      %332 = dma.vmem_to_hbm [thread:$0]  %s327, 512, %s2, [#allocation3], 128, 128, 8
    $region21: #{tpu_custom_call.1} parent=1 // pred_fallthru
      _
    // Predicated region
    $region22: #{tpu_custom_call.1} parent=1 // pred_check
      _
    $region23: #{tpu_custom_call.1} parent=1 // pred_check_branch
      %334 = sbr.rel (0) target = $region25
    $region24: #{tpu_custom_call.1} parent=1 // pred_region
      %335 = dma.done [#allocation3], 512
    $region25: #{tpu_custom_call.1} parent=1 // pred_fallthru
      _
    %336 = vsyncpa [#allocation3], 1

</llo_original>
